<compile_context>
chip_gen: v7x
topology: tpu7x:2x2x1
jax: 0.10.0
libtpu: 0.0.40
codegen_flags: <defaults>
</compile_context>

<pallas_src>
import jax
import jax.numpy as jnp
from jax.experimental import pallas as pl
from jax.experimental.pallas import tpu as pltpu


LANE = 128  # lane-dense padded width for the 2-class classifier output


# ----------------------------------------------------------------------------
# Fused per-batch-tile kernel: vision stem + text stem + split proj + cls head
# ----------------------------------------------------------------------------

def _itm_tile_kernel(
    pooled_img_ref,                 # (TB, Dp)  f32   pre-pooled patches
    wv_ref, bv_ref,                 # (Dp, H) bf16, (1, H) f32
    tok_emb_ref,                    # (TB, T, H) bf16
    mask_ref,                       # (TB, T)  f32
    wt_ref, bt_ref,                 # (H, H) bf16, (1, H) f32
    wp_img_ref, wp_text_ref,        # (H, H) bf16 each  (split Linear(2H->H))
    wc_ref,                         # (H, LANE) bf16    (cls head, lane-padded)
    bias_comb_ref,                  # (1, LANE) f32     (bp@Wc + bc, lane-padded)
    img_head_ref,                   # (TB, LANE) f32 out
    text_head_ref,                  # (TB, LANE) f32 out
):
    f32 = jnp.float32
    bf16 = jnp.bfloat16

    # ---- vision encoder (synthetic linear stem, patches pre-pooled) ----
    img_emb = (
        jnp.dot(pooled_img_ref[...].astype(bf16), wv_ref[...],
                preferred_element_type=f32)
        + bv_ref[...]
    )                                                                 # (TB, H)

    # ---- text encoder (synthetic): attention-mask-weighted pool + linear ----
    mask = mask_ref[...]                                              # (TB, T)
    denom = jnp.maximum(jnp.sum(mask, axis=1, keepdims=True), 1.0)    # (TB, 1)
    # upcast bf16 token embeddings to f32 for the masked reduce (v5e-safe)
    pooled_tok = jnp.sum(tok_emb_ref[...].astype(f32) * mask[..., None],
                         axis=1) / denom                              # (TB, H)
    text_emb = (
        jnp.dot(pooled_tok.astype(bf16), wt_ref[...],
                preferred_element_type=f32)
        + bt_ref[...]
    )                                                                 # (TB, H)

    # ---- split projection (the (2B,2H) pairs tensor is never built) ----
    img_proj = jnp.dot(img_emb.astype(bf16), wp_img_ref[...],
                       preferred_element_type=f32)                    # (TB, H)
    text_proj = jnp.dot(text_emb.astype(bf16), wp_text_ref[...],
                        preferred_element_type=f32)                   # (TB, H)

    # ---- cls head contributions, lane-dense; permutation happens outside ----
    img_head_ref[...] = (
        jnp.dot(img_proj.astype(bf16), wc_ref[...], preferred_element_type=f32)
        + bias_comb_ref[...]
    )
    text_head_ref[...] = jnp.dot(text_proj.astype(bf16), wc_ref[...],
                                 preferred_element_type=f32)


def _choose_tile_b(batch):
    # TODO(synk): sweep per generation (≈8–16 on v7x, 16–32 on v6e/v5e).
    for tb in (16, 8):
        if batch % tb == 0 and batch >= tb:
            return tb
    return batch


def _fused_itm_call(batch, seq, hidden, patch_dim, tile_b):
    grid = (batch // tile_b,)
    in_specs = [
        pl.BlockSpec((tile_b, patch_dim), lambda i: (i, 0)),     # pooled_img
        pl.BlockSpec((patch_dim, hidden), lambda i: (0, 0)),     # wv (resident)
        pl.BlockSpec((1, hidden), lambda i: (0, 0)),             # bv
        pl.BlockSpec((tile_b, seq, hidden), lambda i: (i, 0, 0)),# tok_emb
        pl.BlockSpec((tile_b, seq), lambda i: (i, 0)),           # mask
        pl.BlockSpec((hidden, hidden), lambda i: (0, 0)),        # wt
        pl.BlockSpec((1, hidden), lambda i: (0, 0)),             # bt
        pl.BlockSpec((hidden, hidden), lambda i: (0, 0)),        # wp_img
        pl.BlockSpec((hidden, hidden), lambda i: (0, 0)),        # wp_text
        pl.BlockSpec((hidden, LANE), lambda i: (0, 0)),          # wc_pad
        pl.BlockSpec((1, LANE), lambda i: (0, 0)),               # bias_comb
    ]
    out_specs = [
        pl.BlockSpec((tile_b, LANE), lambda i: (i, 0)),          # img_head
        pl.BlockSpec((tile_b, LANE), lambda i: (i, 0)),          # text_head
    ]
    return pl.pallas_call(
        _itm_tile_kernel,
        out_shape=(
            jax.ShapeDtypeStruct((batch, LANE), jnp.float32),
            jax.ShapeDtypeStruct((batch, LANE), jnp.float32),
        ),
        grid_spec=pltpu.PrefetchScalarGridSpec(
            num_scalar_prefetch=0,
            grid=grid,
            in_specs=in_specs,
            out_specs=out_specs,
        ),
        compiler_params=pltpu.CompilerParams(
            # batch axis is independent -> shard across v7x's 2 TCs; free
            # on single-TC v5e/v6e.
            dimension_semantics=("parallel",),
            # sized with headroom for v7x's 64 MiB physical VMEM; raise on
            # v5e/v6e if larger batch tiles are used.
            vmem_limit_bytes=48 * 1024 * 1024,
        ),
    )


# ----------------------------------------------------------------------------
# Python wrapper (glue: patchify+pool, embedding gather, permutation, labels)
# ----------------------------------------------------------------------------

def images_to_pooled_patches(images, patch):
    """NCHW -> mean over non-overlapping patches -> (B, C*patch*patch)."""
    B, C, H, W = images.shape
    gh, gw = H // patch, W // patch
    x = images.reshape(B, C, gh, patch, gw, patch)
    x = jnp.transpose(x, (0, 2, 4, 1, 3, 5))            # (B, gh, gw, C, ph, pw)
    x = x.reshape(B, gh * gw, C * patch * patch)
    # pool BEFORE the (linear) patch-embed matmul: cuts kernel vision DMA by P
    return jnp.mean(x, axis=1)                          # (B, C*patch*patch)


def make_params(key, hidden, patch_dim, vocab, scale=0.02):
    ks = jax.random.split(key, 6)
    wv = scale * jax.random.normal(ks[0], (patch_dim, hidden), jnp.float32)
    emb = scale * jax.random.normal(ks[1], (vocab, hidden), jnp.float32)
    wt = scale * jax.random.normal(ks[2], (hidden, hidden), jnp.float32)
    wp = scale * jax.random.normal(ks[3], (2 * hidden, hidden), jnp.float32)
    wc = scale * jax.random.normal(ks[4], (hidden, 2), jnp.float32)
    bp = jnp.zeros((1, hidden), jnp.float32)
    bc = jnp.zeros((1, 2), jnp.float32)
    # fold projection bias through the cls head: bias_comb = bp@Wc + bc
    bias_comb = bp @ wc + bc                                         # (1, 2)
    return {
        # weights stored bf16 (MXU operands, halves weight DMA); biases f32
        "wv": wv.astype(jnp.bfloat16),
        "bv": jnp.zeros((1, hidden), jnp.float32),
        "emb_table": emb.astype(jnp.bfloat16),   # bf16 gather: halves tok_emb DMA
        "wt": wt.astype(jnp.bfloat16),
        "bt": jnp.zeros((1, hidden), jnp.float32),
        # projection Linear(2H, H) split into image / text halves
        "wp_img": wp[:hidden].astype(jnp.bfloat16),
        "wp_text": wp[hidden:].astype(jnp.bfloat16),
        # cls_head Linear(H, 2) padded to a lane-dense (H, 128) tile
        "wc_pad": jnp.pad(wc, ((0, 0), (0, LANE - 2))).astype(jnp.bfloat16),
        "bias_comb_pad": jnp.pad(bias_comb, ((0, 0), (0, LANE - 2))),
    }


def _itm_forward_impl(params, images, input_ids, attention_mask, perm_key, *,
                      patch=8, generate_negatives=True):
    B = images.shape[0]

    pooled_img = images_to_pooled_patches(images, patch)      # (B, Dp) f32
    tok_emb = params["emb_table"][input_ids]                  # (B, T, H) bf16
    mask_f = attention_mask.astype(jnp.float32)               # (B, T)

    Dp = pooled_img.shape[1]
    T, H = tok_emb.shape[1], tok_emb.shape[2]
    tb = _choose_tile_b(B)

    img_head, text_head = _fused_itm_call(B, T, H, Dp, tb)(
        pooled_img, params["wv"], params["bv"],
        tok_emb, mask_f, params["wt"], params["bt"],
        params["wp_img"], params["wp_text"],
        params["wc_pad"], params["bias_comb_pad"],
    )                                                         # 2 x (B, 128)

    pos_logits = (img_head + text_head)[:, :2]                # (B, 2)
    if generate_negatives:
        shuffled = jax.random.permutation(perm_key, B)        # like torch.randperm
        neg_logits = (img_head + jnp.take(text_head, shuffled, axis=0))[:, :2]
        logits = jnp.concatenate([pos_logits, neg_logits], axis=0)   # (2B, 2)
        labels = jnp.concatenate(
            [jnp.ones((B,), jnp.int32), jnp.zeros((B,), jnp.int32)], axis=0)
    else:
        logits = pos_logits                                   # (B, 2)
        labels = jnp.ones((B,), jnp.int32)
    return logits, labels


# jit the whole wrapper: gather + patch-pool + pallas_call + permute fuse into
# one dispatch.
itm_forward = jax.jit(_itm_forward_impl,
                      static_argnames=("patch", "generate_negatives"))


# ----------------------------------------------------------------------------
# main
# ----------------------------------------------------------------------------

if __name__ == "__main__":
    B, C, Himg, Wimg = 2, 4, 16, 16
    T, hidden, vocab, patch = 8, 32, 100, 8
    patch_dim = C * patch * patch

    key = jax.random.PRNGKey(0)
    k_param, k_img, k_ids, k_perm = jax.random.split(key, 4)

    params = make_params(k_param, hidden, patch_dim, vocab)

    images = jax.random.normal(k_img, (B, C, Himg, Wimg), jnp.float32)  # NCHW
    input_ids = jax.random.randint(k_ids, (B, T), 0, vocab, jnp.int32)
    attention_mask = jnp.ones((B, T), jnp.int32)

    logits, labels = itm_forward(params, images, input_ids, attention_mask,
                                 k_perm, patch=patch, generate_negatives=True)
    jax.block_until_ready(logits)
    jax.block_until_ready(labels)

    assert logits.shape == (2 * B, 2)
    assert labels.shape == (2 * B,)
    print("KERNEL_OK")
</pallas_src>

<mosaic_0001>
module attributes {stable_mosaic.version = 11 : i64} {
  func.func @_itm_tile_kernel(%arg0: i32, %arg1: memref<2x256xf32, #tpu.memory_space<vmem>>, %arg2: memref<256x32xbf16, #tpu.memory_space<vmem>>, %arg3: memref<1x32xf32, #tpu.memory_space<vmem>>, %arg4: memref<2x8x32xbf16, #tpu.memory_space<vmem>>, %arg5: memref<2x8xf32, #tpu.memory_space<vmem>>, %arg6: memref<32x32xbf16, #tpu.memory_space<vmem>>, %arg7: memref<1x32xf32, #tpu.memory_space<vmem>>, %arg8: memref<32x32xbf16, #tpu.memory_space<vmem>>, %arg9: memref<32x32xbf16, #tpu.memory_space<vmem>>, %arg10: memref<32x128xbf16, #tpu.memory_space<vmem>>, %arg11: memref<1x128xf32, #tpu.memory_space<vmem>>, %arg12: memref<2x128xf32, #tpu.memory_space<vmem>>, %arg13: memref<2x128xf32, #tpu.memory_space<vmem>>) attributes {dimension_semantics = [#tpu.dimension_semantics<parallel>], iteration_bounds = array<i64: 1>, scalar_prefetch = 0 : i64, scratch_operands = 0 : i64, tpu.core_type = #tpu.core_type<tc>, window_params = [{transform_indices = @transform_0, window_bounds = array<i64: 2, 256>}, {pipeline_mode = #tpu.pipeline_mode<synchronous>, transform_indices = @transform_1, window_bounds = array<i64: 256, 32>}, {pipeline_mode = #tpu.pipeline_mode<synchronous>, transform_indices = @transform_2, window_bounds = array<i64: 1, 32>}, {transform_indices = @transform_3, window_bounds = array<i64: 2, 8, 32>}, {transform_indices = @transform_4, window_bounds = array<i64: 2, 8>}, {pipeline_mode = #tpu.pipeline_mode<synchronous>, transform_indices = @transform_5, window_bounds = array<i64: 32, 32>}, {pipeline_mode = #tpu.pipeline_mode<synchronous>, transform_indices = @transform_6, window_bounds = array<i64: 1, 32>}, {pipeline_mode = #tpu.pipeline_mode<synchronous>, transform_indices = @transform_7, window_bounds = array<i64: 32, 32>}, {pipeline_mode = #tpu.pipeline_mode<synchronous>, transform_indices = @transform_8, window_bounds = array<i64: 32, 32>}, {pipeline_mode = #tpu.pipeline_mode<synchronous>, transform_indices = @transform_9, window_bounds = array<i64: 32, 128>}, {pipeline_mode = #tpu.pipeline_mode<synchronous>, transform_indices = @transform_10, window_bounds = array<i64: 1, 128>}, {transform_indices = @transform_11, window_bounds = array<i64: 2, 128>}, {transform_indices = @transform_12, window_bounds = array<i64: 2, 128>}]} {
    %c0 = arith.constant 0 : index
    %c0_0 = arith.constant 0 : index
    %0 = vector.load %arg1[%c0, %c0_0] : memref<2x256xf32, #tpu.memory_space<vmem>>, vector<2x256xf32>
    %1 = arith.truncf %0 : vector<2x256xf32> to vector<2x256xbf16>
    %c0_1 = arith.constant 0 : index
    %c0_2 = arith.constant 0 : index
    %2 = vector.load %arg2[%c0_1, %c0_2] : memref<256x32xbf16, #tpu.memory_space<vmem>>, vector<256x32xbf16>
    %cst = arith.constant dense<0.000000e+00> : vector<2x32xf32>
    %3 = tpu.matmul %1, %2, %cst {dimension_numbers = #tpu.dot_dimension_numbers<[1], [0], [0], [1], [0, 0, 1, 1], [], []>} : vector<2x256xbf16>, vector<256x32xbf16>, vector<2x32xf32> -> vector<2x32xf32>
    %c0_3 = arith.constant 0 : index
    %c0_4 = arith.constant 0 : index
    %4 = vector.load %arg3[%c0_3, %c0_4] : memref<1x32xf32, #tpu.memory_space<vmem>>, vector<1x32xf32>
    %5 = vector.broadcast %4 : vector<1x32xf32> to vector<2x32xf32>
    %6 = arith.addf %3, %5 : vector<2x32xf32>
    %c0_5 = arith.constant 0 : index
    %c0_6 = arith.constant 0 : index
    %7 = vector.load %arg5[%c0_5, %c0_6] : memref<2x8xf32, #tpu.memory_space<vmem>>, vector<2x8xf32>
    %cst_7 = arith.constant dense<0.000000e+00> : vector<2xf32>
    %8 = vector.multi_reduction <add>, %7, %cst_7 [1] : vector<2x8xf32> to vector<2xf32>
    %9 = vector.shape_cast %8 : vector<2xf32> to vector<2x1xf32>
    %cst_8 = arith.constant 1.000000e+00 : f32
    %10 = vector.broadcast %cst_8 : f32 to vector<2x1xf32>
    %11 = arith.maximumf %9, %10 : vector<2x1xf32>
    %c0_9 = arith.constant 0 : index
    %c0_10 = arith.constant 0 : index
    %c0_11 = arith.constant 0 : index
    %12 = vector.load %arg4[%c0_9, %c0_10, %c0_11] : memref<2x8x32xbf16, #tpu.memory_space<vmem>>, vector<2x8x32xbf16>
    %13 = arith.extf %12 : vector<2x8x32xbf16> to vector<2x8x32xf32>
    %14 = vector.shape_cast %7 : vector<2x8xf32> to vector<2x8x1xf32>
    %15 = vector.broadcast %14 : vector<2x8x1xf32> to vector<2x8x32xf32>
    %16 = arith.mulf %13, %15 : vector<2x8x32xf32>
    %cst_12 = arith.constant dense<0.000000e+00> : vector<2x32xf32>
    %17 = vector.multi_reduction <add>, %16, %cst_12 [1] : vector<2x8x32xf32> to vector<2x32xf32>
    %18 = vector.broadcast %11 : vector<2x1xf32> to vector<2x32xf32>
    %19 = arith.divf %17, %18 : vector<2x32xf32>
    %20 = arith.truncf %19 : vector<2x32xf32> to vector<2x32xbf16>
    %c0_13 = arith.constant 0 : index
    %c0_14 = arith.constant 0 : index
    %21 = vector.load %arg6[%c0_13, %c0_14] : memref<32x32xbf16, #tpu.memory_space<vmem>>, vector<32x32xbf16>
    %cst_15 = arith.constant dense<0.000000e+00> : vector<2x32xf32>
    %22 = tpu.matmul %20, %21, %cst_15 {dimension_numbers = #tpu.dot_dimension_numbers<[1], [0], [0], [1], [0, 0, 1, 1], [], []>} : vector<2x32xbf16>, vector<32x32xbf16>, vector<2x32xf32> -> vector<2x32xf32>
    %c0_16 = arith.constant 0 : index
    %c0_17 = arith.constant 0 : index
    %23 = vector.load %arg7[%c0_16, %c0_17] : memref<1x32xf32, #tpu.memory_space<vmem>>, vector<1x32xf32>
    %24 = vector.broadcast %23 : vector<1x32xf32> to vector<2x32xf32>
    %25 = arith.addf %22, %24 : vector<2x32xf32>
    %26 = arith.truncf %6 : vector<2x32xf32> to vector<2x32xbf16>
    %c0_18 = arith.constant 0 : index
    %c0_19 = arith.constant 0 : index
    %27 = vector.load %arg8[%c0_18, %c0_19] : memref<32x32xbf16, #tpu.memory_space<vmem>>, vector<32x32xbf16>
    %cst_20 = arith.constant dense<0.000000e+00> : vector<2x32xf32>
    %28 = tpu.matmul %26, %27, %cst_20 {dimension_numbers = #tpu.dot_dimension_numbers<[1], [0], [0], [1], [0, 0, 1, 1], [], []>} : vector<2x32xbf16>, vector<32x32xbf16>, vector<2x32xf32> -> vector<2x32xf32>
    %29 = arith.truncf %25 : vector<2x32xf32> to vector<2x32xbf16>
    %c0_21 = arith.constant 0 : index
    %c0_22 = arith.constant 0 : index
    %30 = vector.load %arg9[%c0_21, %c0_22] : memref<32x32xbf16, #tpu.memory_space<vmem>>, vector<32x32xbf16>
    %cst_23 = arith.constant dense<0.000000e+00> : vector<2x32xf32>
    %31 = tpu.matmul %29, %30, %cst_23 {dimension_numbers = #tpu.dot_dimension_numbers<[1], [0], [0], [1], [0, 0, 1, 1], [], []>} : vector<2x32xbf16>, vector<32x32xbf16>, vector<2x32xf32> -> vector<2x32xf32>
    %32 = arith.truncf %28 : vector<2x32xf32> to vector<2x32xbf16>
    %c0_24 = arith.constant 0 : index
    %c0_25 = arith.constant 0 : index
    %33 = vector.load %arg10[%c0_24, %c0_25] : memref<32x128xbf16, #tpu.memory_space<vmem>>, vector<32x128xbf16>
    %cst_26 = arith.constant dense<0.000000e+00> : vector<2x128xf32>
    %34 = tpu.matmul %32, %33, %cst_26 {dimension_numbers = #tpu.dot_dimension_numbers<[1], [0], [0], [1], [0, 0, 1, 1], [], []>} : vector<2x32xbf16>, vector<32x128xbf16>, vector<2x128xf32> -> vector<2x128xf32>
    %c0_27 = arith.constant 0 : index
    %c0_28 = arith.constant 0 : index
    %35 = vector.load %arg11[%c0_27, %c0_28] : memref<1x128xf32, #tpu.memory_space<vmem>>, vector<1x128xf32>
    %36 = vector.broadcast %35 : vector<1x128xf32> to vector<2x128xf32>
    %37 = arith.addf %34, %36 : vector<2x128xf32>
    %c0_29 = arith.constant 0 : index
    %c0_30 = arith.constant 0 : index
    %38 = vector.load %arg12[%c0_29, %c0_30] : memref<2x128xf32, #tpu.memory_space<vmem>>, vector<2x128xf32>
    tpu.vector_store %arg12[%c0_29, %c0_30], %37 {strides = array<i32>} : memref<2x128xf32, #tpu.memory_space<vmem>>, vector<2x128xf32>,
    %39 = arith.truncf %31 : vector<2x32xf32> to vector<2x32xbf16>
    %c0_31 = arith.constant 0 : index
    %c0_32 = arith.constant 0 : index
    %40 = vector.load %arg10[%c0_31, %c0_32] : memref<32x128xbf16, #tpu.memory_space<vmem>>, vector<32x128xbf16>
    %cst_33 = arith.constant dense<0.000000e+00> : vector<2x128xf32>
    %41 = tpu.matmul %39, %40, %cst_33 {dimension_numbers = #tpu.dot_dimension_numbers<[1], [0], [0], [1], [0, 0, 1, 1], [], []>} : vector<2x32xbf16>, vector<32x128xbf16>, vector<2x128xf32> -> vector<2x128xf32>
    %c0_34 = arith.constant 0 : index
    %c0_35 = arith.constant 0 : index
    %42 = vector.load %arg13[%c0_34, %c0_35] : memref<2x128xf32, #tpu.memory_space<vmem>>, vector<2x128xf32>
    tpu.vector_store %arg13[%c0_34, %c0_35], %41 {strides = array<i32>} : memref<2x128xf32, #tpu.memory_space<vmem>>, vector<2x128xf32>,
    return
  }
  func.func @transform_0(%arg0: i32) -> (i32, i32) {
    %c0_i32 = arith.constant 0 : i32
    %c0_i32_0 = arith.constant 0 : i32
    return %arg0, %c0_i32 : i32, i32
  }
  func.func @transform_1(%arg0: i32) -> (i32, i32) {
    %c0_i32 = arith.constant 0 : i32
    %c0_i32_0 = arith.constant 0 : i32
    %c0_i32_1 = arith.constant 0 : i32
    return %c0_i32, %c0_i32_0 : i32, i32
  }
  func.func @transform_2(%arg0: i32) -> (i32, i32) {
    %c0_i32 = arith.constant 0 : i32
    %c0_i32_0 = arith.constant 0 : i32
    %c0_i32_1 = arith.constant 0 : i32
    return %c0_i32, %c0_i32_0 : i32, i32
  }
  func.func @transform_3(%arg0: i32) -> (i32, i32, i32) {
    %c0_i32 = arith.constant 0 : i32
    %c0_i32_0 = arith.constant 0 : i32
    %c0_i32_1 = arith.constant 0 : i32
    return %arg0, %c0_i32, %c0_i32_0 : i32, i32, i32
  }
  func.func @transform_4(%arg0: i32) -> (i32, i32) {
    %c0_i32 = arith.constant 0 : i32
    %c0_i32_0 = arith.constant 0 : i32
    return %arg0, %c0_i32 : i32, i32
  }
  func.func @transform_5(%arg0: i32) -> (i32, i32) {
    %c0_i32 = arith.constant 0 : i32
    %c0_i32_0 = arith.constant 0 : i32
    %c0_i32_1 = arith.constant 0 : i32
    return %c0_i32, %c0_i32_0 : i32, i32
  }
  func.func @transform_6(%arg0: i32) -> (i32, i32) {
    %c0_i32 = arith.constant 0 : i32
    %c0_i32_0 = arith.constant 0 : i32
    %c0_i32_1 = arith.constant 0 : i32
    return %c0_i32, %c0_i32_0 : i32, i32
  }
  func.func @transform_7(%arg0: i32) -> (i32, i32) {
    %c0_i32 = arith.constant 0 : i32
    %c0_i32_0 = arith.constant 0 : i32
    %c0_i32_1 = arith.constant 0 : i32
    return %c0_i32, %c0_i32_0 : i32, i32
  }
  func.func @transform_8(%arg0: i32) -> (i32, i32) {
    %c0_i32 = arith.constant 0 : i32
    %c0_i32_0 = arith.constant 0 : i32
    %c0_i32_1 = arith.constant 0 : i32
    return %c0_i32, %c0_i32_0 : i32, i32
  }
  func.func @transform_9(%arg0: i32) -> (i32, i32) {
    %c0_i32 = arith.constant 0 : i32
    %c0_i32_0 = arith.constant 0 : i32
    %c0_i32_1 = arith.constant 0 : i32
    return %c0_i32, %c0_i32_0 : i32, i32
  }
  func.func @transform_10(%arg0: i32) -> (i32, i32) {
    %c0_i32 = arith.constant 0 : i32
    %c0_i32_0 = arith.constant 0 : i32
    %c0_i32_1 = arith.constant 0 : i32
    return %c0_i32, %c0_i32_0 : i32, i32
  }
  func.func @transform_11(%arg0: i32) -> (i32, i32) {
    %c0_i32 = arith.constant 0 : i32
    %c0_i32_0 = arith.constant 0 : i32
    return %arg0, %c0_i32 : i32, i32
  }
  func.func @transform_12(%arg0: i32) -> (i32, i32) {
    %c0_i32 = arith.constant 0 : i32
    %c0_i32_0 = arith.constant 0 : i32
    return %arg0, %c0_i32 : i32, i32
  }
}

</mosaic_0001>

<llo_original>
// kernel: _itm_forward_impl.1
$region0: #{_itm_forward_impl.1}
  #allocation0 [shape = 'u32[]', space=smem, size = 0x4, offset = 0x4, fixed_abs, tag = 'smem constant byte address 0x4 - core index']
  #allocation1 [shape = 'u32[144,128]{1,0:T(1,128)}', space=vmem, size = 0x12000, scoped, tag = 'internal scratch']
  %s0 = inlined_call_operand.vmem [shape: f32[2,256], index: 0, kind: input, shape index: {}]
  %s1 = inlined_call_operand.vmem [shape: bf16[256,32], index: 1, kind: input, shape index: {}]
  %s2 = inlined_call_operand.vmem [shape: f32[1,32], index: 2, kind: input, shape index: {}]
  %s3 = inlined_call_operand.vmem [shape: bf16[2,8,32], index: 3, kind: input, shape index: {}]
  %s4 = inlined_call_operand.vmem [shape: f32[2,8], index: 4, kind: input, shape index: {}]
  %s5 = inlined_call_operand.vmem [shape: bf16[32,32], index: 5, kind: input, shape index: {}]
  %s6 = inlined_call_operand.vmem [shape: f32[1,32], index: 6, kind: input, shape index: {}]
  %s7 = inlined_call_operand.vmem [shape: bf16[32,32], index: 7, kind: input, shape index: {}]
  %s8 = inlined_call_operand.vmem [shape: bf16[32,32], index: 8, kind: input, shape index: {}]
  %s9 = inlined_call_operand.vmem [shape: bf16[32,128], index: 9, kind: input, shape index: {}]
  %s10 = inlined_call_operand.vmem [shape: f32[1,128], index: 10, kind: input, shape index: {}]
  %s11 = inlined_call_operand.vmem [shape: f32[2,128], index: 11, kind: output, shape index: {0}]
  %s12 = inlined_call_operand.vmem [shape: f32[2,128], index: 12, kind: output, shape index: {1}]
  %13 = xla_tuple %s11, %s12
  %s14 = sld [smem:[#allocation0]]
  $region62: #{_itm_forward_impl.1} parent=0
    _
  %s16 = ssub.s32 1, %s14
  %s17 = scalar_select 0, %s16, %s14
  // Predicated region
  $region2: #{_itm_forward_impl.1} parent=0 // pred_check
    _
  $region3: #{_itm_forward_impl.1} parent=0 // pred_check_branch
    %19 = sbr.rel (0) target = $region5
  $region4: #{_itm_forward_impl.1} parent=0 // pred_region
    _
  $region5: #{_itm_forward_impl.1} parent=0 // pred_fallthru
    _
  // Predicated region
  $region6: #{_itm_forward_impl.1} parent=0 // pred_check
    _
  $region7: #{_itm_forward_impl.1} parent=0 // pred_check_branch
    %21 = sbr.rel (0) target = $region9
  $region8: #{_itm_forward_impl.1} parent=0 // pred_region
    _
  $region9: #{_itm_forward_impl.1} parent=0 // pred_fallthru
    _
  // Predicated region
  $region10: #{_itm_forward_impl.1} parent=0 // pred_check
    _
  $region11: #{_itm_forward_impl.1} parent=0 // pred_check_branch
    %23 = sbr.rel (0) target = $region13
  $region12: #{_itm_forward_impl.1} parent=0 // pred_region
    _
  $region13: #{_itm_forward_impl.1} parent=0 // pred_fallthru
    _
  // Predicated region
  $region14: #{_itm_forward_impl.1} parent=0 // pred_check
    _
  $region15: #{_itm_forward_impl.1} parent=0 // pred_check_branch
    %25 = sbr.rel (0) target = $region17
  $region16: #{_itm_forward_impl.1} parent=0 // pred_region
    _
  $region17: #{_itm_forward_impl.1} parent=0 // pred_fallthru
    _
  // Predicated region
  $region18: #{_itm_forward_impl.1} parent=0 // pred_check
    _
  $region19: #{_itm_forward_impl.1} parent=0 // pred_check_branch
    %27 = sbr.rel (0) target = $region21
  $region20: #{_itm_forward_impl.1} parent=0 // pred_region
    _
  $region21: #{_itm_forward_impl.1} parent=0 // pred_fallthru
    _
  // Predicated region
  $region22: #{_itm_forward_impl.1} parent=0 // pred_check
    _
  $region23: #{_itm_forward_impl.1} parent=0 // pred_check_branch
    %29 = sbr.rel (0) target = $region25
  $region24: #{_itm_forward_impl.1} parent=0 // pred_region
    _
  $region25: #{_itm_forward_impl.1} parent=0 // pred_fallthru
    _
  // Predicated region
  $region26: #{_itm_forward_impl.1} parent=0 // pred_check
    _
  $region27: #{_itm_forward_impl.1} parent=0 // pred_check_branch
    %31 = sbr.rel (0) target = $region29
  $region28: #{_itm_forward_impl.1} parent=0 // pred_region
    _
  $region29: #{_itm_forward_impl.1} parent=0 // pred_fallthru
    _
  // Predicated region
  $region30: #{_itm_forward_impl.1} parent=0 // pred_check
    _
  $region31: #{_itm_forward_impl.1} parent=0 // pred_check_branch
    %33 = sbr.rel (0) target = $region33
  $region32: #{_itm_forward_impl.1} parent=0 // pred_region
    _
  $region33: #{_itm_forward_impl.1} parent=0 // pred_fallthru
    _
  // Predicated region
  $region34: #{_itm_forward_impl.1} parent=0 // pred_check
    _
  $region35: #{_itm_forward_impl.1} parent=0 // pred_check_branch
    %35 = sbr.rel (0) target = $region37
  $region36: #{_itm_forward_impl.1} parent=0 // pred_region
    _
  $region37: #{_itm_forward_impl.1} parent=0 // pred_fallthru
    _
  // Predicated region
  $region38: #{_itm_forward_impl.1} parent=0 // pred_check
    _
  $region39: #{_itm_forward_impl.1} parent=0 // pred_check_branch
    %37 = sbr.rel (0) target = $region41
  $region40: #{_itm_forward_impl.1} parent=0 // pred_region
    _
  $region41: #{_itm_forward_impl.1} parent=0 // pred_fallthru
    _
  // Predicated region
  $region42: #{_itm_forward_impl.1} parent=0 // pred_check
    _
  $region43: #{_itm_forward_impl.1} parent=0 // pred_check_branch
    %39 = sbr.rel (0) target = $region45
  $region44: #{_itm_forward_impl.1} parent=0 // pred_region
    _
  $region45: #{_itm_forward_impl.1} parent=0 // pred_fallthru
    _
  %v41 = vld [vmem:[%s0] sm:$0xf]
  %v44 = vunpack.c.l.s4 1983009808
  %v45 = vunpack.c.0.s8 %v44
  %v46 = vlaneseq
  %v47 = vshrl.u32 %v46, 7
  %v48 = vsub.s32 %v45, %v47
  %v49 = vrot.slane %v41, %v48
  %v50 = vcombine.high %v49, %v49
  %v53 = vpack.c.bf16 %v49, %v49
  %v54 = vpack.c.bf16 %v50, %v50
  %v55 = vld [vmem:[%s1] sm:$0xf]
  %v56 = vld [vmem:[%s1 + $0x4] sm:$0xf]
  %v57 = vld [vmem:[%s1 + $0x8] sm:$0xf]
  %v58 = vld [vmem:[%s1 + $0xc] sm:$0xf]
  %v59 = vld [vmem:[%s1 + $0x10] sm:$0xf]
  %v60 = vld [vmem:[%s1 + $0x14] sm:$0xf]
  %v61 = vld [vmem:[%s1 + $0x18] sm:$0xf]
  %v62 = vld [vmem:[%s1 + $0x1c] sm:$0xf]
  %v63 = vld [vmem:[%s1 + $0x20] sm:$0xf]
  %v64 = vld [vmem:[%s1 + $0x24] sm:$0xf]
  %v65 = vld [vmem:[%s1 + $0x28] sm:$0xf]
  %v66 = vld [vmem:[%s1 + $0x2c] sm:$0xf]
  %v67 = vld [vmem:[%s1 + $0x30] sm:$0xf]
  %v68 = vld [vmem:[%s1 + $0x34] sm:$0xf]
  %v69 = vld [vmem:[%s1 + $0x38] sm:$0xf]
  %v70 = vld [vmem:[%s1 + $0x3c] sm:$0xf]
  %v71 = vld [vmem:[%s1 + $0x40] sm:$0xf]
  %v72 = vld [vmem:[%s1 + $0x44] sm:$0xf]
  %v73 = vld [vmem:[%s1 + $0x48] sm:$0xf]
  %v74 = vld [vmem:[%s1 + $0x4c] sm:$0xf]
  %v75 = vld [vmem:[%s1 + $0x50] sm:$0xf]
  %v76 = vld [vmem:[%s1 + $0x54] sm:$0xf]
  %v77 = vld [vmem:[%s1 + $0x58] sm:$0xf]
  %v78 = vld [vmem:[%s1 + $0x5c] sm:$0xf]
  %v79 = vld [vmem:[%s1 + $0x60] sm:$0xf]
  %v80 = vld [vmem:[%s1 + $0x64] sm:$0xf]
  %v81 = vld [vmem:[%s1 + $0x68] sm:$0xf]
  %v82 = vld [vmem:[%s1 + $0x6c] sm:$0xf]
  %v83 = vld [vmem:[%s1 + $0x70] sm:$0xf]
  %v84 = vld [vmem:[%s1 + $0x74] sm:$0xf]
  %v85 = vld [vmem:[%s1 + $0x78] sm:$0xf]
  %v86 = vld [vmem:[%s1 + $0x7c] sm:$0xf]
  %v87 = vld [vmem:[%s2] sm:$0x1]
  %v89 = vlaneseq
  %v90 = vshrl.u32 %v89, 7
  %v91 = vsub.s32 0, %v90
  %v92 = vrot.slane %v87, %v91
  %v126 = vunpack.c.l.b16 %v55
  %v127 = vunpack.c.l.b16 %v56
  %v128 = vunpack.c.l.b16 %v57
  %v129 = vunpack.c.l.b16 %v58
  %v130 = vunpack.c.l.b16 %v59
  %v131 = vunpack.c.l.b16 %v60
  %v132 = vunpack.c.l.b16 %v61
  %v133 = vunpack.c.l.b16 %v62
  %v134 = vunpack.c.l.b16 %v63
  %v135 = vunpack.c.l.b16 %v64
  %v136 = vunpack.c.l.b16 %v65
  %v137 = vunpack.c.l.b16 %v66
  %v138 = vunpack.c.l.b16 %v67
  %v139 = vunpack.c.l.b16 %v68
  %v140 = vunpack.c.l.b16 %v69
  %v141 = vunpack.c.l.b16 %v70
  %v142 = vunpack.c.l.b16 %v71
  %v143 = vunpack.c.l.b16 %v72
  %v144 = vunpack.c.l.b16 %v73
  %v145 = vunpack.c.l.b16 %v74
  %v146 = vunpack.c.l.b16 %v75
  %v147 = vunpack.c.l.b16 %v76
  %v148 = vunpack.c.l.b16 %v77
  %v149 = vunpack.c.l.b16 %v78
  %v150 = vunpack.c.l.b16 %v79
  %v151 = vunpack.c.l.b16 %v80
  %v152 = vunpack.c.l.b16 %v81
  %v153 = vunpack.c.l.b16 %v82
  %v154 = vunpack.c.l.b16 %v83
  %v155 = vunpack.c.l.b16 %v84
  %v156 = vunpack.c.l.b16 %v85
  %v157 = vunpack.c.l.b16 %v86
  %v158 = vpack.c.b16 %v127, %v126
  %v159 = vpack.c.b16 %v129, %v128
  %v160 = vpack.c.b16 %v131, %v130
  %v161 = vpack.c.b16 %v133, %v132
  %v162 = vpack.c.b16 %v135, %v134
  %v163 = vpack.c.b16 %v137, %v136
  %v164 = vpack.c.b16 %v139, %v138
  %v165 = vpack.c.b16 %v141, %v140
  %v166 = vpack.c.b16 %v143, %v142
  %v167 = vpack.c.b16 %v145, %v144
  %v168 = vpack.c.b16 %v147, %v146
  %v169 = vpack.c.b16 %v149, %v148
  %v170 = vpack.c.b16 %v151, %v150
  %v171 = vpack.c.b16 %v153, %v152
  %v172 = vpack.c.b16 %v155, %v154
  %v173 = vpack.c.b16 %v157, %v156
  %190 = vmatprep.subr.bf16.mxu0 0
  %191 = vmatpush1.bf16.msra.mxu0 %v158
  %192 = vmatprep.subr.bf16.mxu0 0
  %193 = vmatpush1.bf16.msra.mxu0 %v159
  %194 = vmatprep.subr.bf16.mxu0 0
  %195 = vmatpush1.bf16.msra.mxu0 %v160
  %196 = vmatprep.subr.bf16.mxu0 0
  %197 = vmatpush1.bf16.msra.mxu0 %v161
  %198 = vmatprep.subr.bf16.mxu0 0
  %199 = vmatpush1.bf16.msra.mxu0 %v162
  %200 = vmatprep.subr.bf16.mxu0 0
  %201 = vmatpush1.bf16.msra.mxu0 %v163
  %202 = vmatprep.subr.bf16.mxu0 0
  %203 = vmatpush1.bf16.msra.mxu0 %v164
  %204 = vmatprep.subr.bf16.mxu0 0
  %205 = vmatpush1.bf16.msra.mxu0 %v165
  %206 = vmatprep.subr.bf16.mxu0 0
  %207 = vmatpush1.bf16.msra.mxu0 %v166
  %208 = vmatprep.subr.bf16.mxu0 0
  %209 = vmatpush1.bf16.msra.mxu0 %v167
  %210 = vmatprep.subr.bf16.mxu0 0
  %211 = vmatpush1.bf16.msra.mxu0 %v168
  %212 = vmatprep.subr.bf16.mxu0 0
  %213 = vmatpush1.bf16.msra.mxu0 %v169
  %214 = vmatprep.subr.bf16.mxu0 0
  %215 = vmatpush1.bf16.msra.mxu0 %v170
  %216 = vmatprep.subr.bf16.mxu0 0
  %217 = vmatpush1.bf16.msra.mxu0 %v171
  %218 = vmatprep.subr.bf16.mxu0 0
  %219 = vmatpush1.bf16.msra.mxu0 %v172
  %220 = vmatprep.subr.bf16.mxu0 0
  %221 = vmatpush1.bf16.msra.mxu0 %v173
  %222 = vmatprep.mubr.bf16.mxu0 %v54
  %223 = vmatmul.mubr.bf16.gmra.mrb[0].mxu0 %v53
  %v224 = vpop.f32.mrb[0].mxu0
  %v225 = vadd.f32 %v92, %v224
  %v226 = vpop.f32.mrb[0].mxu0
  %v227 = vpop.f32.mrb[0].mxu0
  %v228 = vpop.f32.mrb[0].mxu0
  %229 = vdwg.mxu0
  %v230 = vld [vmem:[%s4] sm:$0x3]
  %vm231 = vcmask 58368
  %v232 = vsel %vm231, %v230, 0.0
  %233 = vadd.xlane.f32.xlu0 %v232
  %v234 = vpop.xlane.xlu0 %233
  %v235 = vmax.f32 %v234, 1.0
  %v236 = vld [vmem:[%s3] sm:$0xf]
  %v237 = vld [vmem:[%s3 + $0x4] sm:$0xf]
  %v238 = vunpack.c.l.bf16 %v236
  %v239 = vunpack.c.l.bf16 %v237
  %v240 = vlaneseq
  %v241 = vshrl.u32 %v240, 7
  %v242 = vsub.s32 0, %v241
  %v243 = vrot.slane %v230, %v242
  %245 = vbcast.lane.b32.xlu0 %v243, 256
  %v246 = vpop.permute.xlu0 %245
  %v247 = vlaneseq
  %v248 = vshrl.u32 %v247, 7
  %v249 = vsub.s32 1, %v248
  %v250 = vrot.slane %v230, %v249
  %252 = vbcast.lane.b32.xlu0 %v250, 256
  %v253 = vpop.permute.xlu0 %252
  %v254 = vmul.f32 %v238, %v246
  %v255 = vmul.f32 %v239, %v253
  %vm256 = vcmask 261120
  %v257 = vsel %vm256, %v254, 0.0
  %v258 = vrot.slane %v257, 4
  %v259 = vadd.f32 %v257, %v258
  %v260 = vrot.slane %v259, 2
  %v261 = vadd.f32 %v259, %v260
  %v262 = vrot.slane %v261, 1
  %v263 = vadd.f32 %v261, %v262
  %v264 = vsel %vm256, %v255, 0.0
  %v265 = vrot.slane %v264, 4
  %v266 = vadd.f32 %v264, %v265
  %v267 = vrot.slane %v266, 2
  %v268 = vadd.f32 %v266, %v267
  %v269 = vrot.slane %v268, 1
  %v270 = vadd.f32 %v268, %v269
  %v272 = vrot.slane %v235, 1
  %v275 = vrcp.pop %v235
  %v276 = vmul.f32 %v263, %v275
  %v277 = vrcp.pop %v272
  %v278 = vmul.f32 %v270, %v277
  %v279 = vpack.c.bf16 %v276, %v276
  %v280 = vpack.c.bf16 %v278, %v278
  %v281 = vld [vmem:[%s5] sm:$0xf]
  %v282 = vld [vmem:[%s5 + $0x4] sm:$0xf]
  %v283 = vld [vmem:[%s5 + $0x8] sm:$0xf]
  %v284 = vld [vmem:[%s5 + $0xc] sm:$0xf]
  %v285 = vld [vmem:[%s6] sm:$0x1]
  %v287 = vlaneseq
  %v288 = vshrl.u32 %v287, 7
  %v289 = vsub.s32 0, %v288
  %v290 = vrot.slane %v285, %v289
  %v294 = vunpack.c.l.b16 %v279
  %v295 = vunpack.c.l.b16 %v280
  %v296 = vrot.slane %v295, 7
  %vm297 = vcmask 1041409
  %v298 = vsel %vm297, %v296, %v294
  %v299 = vpack.c.b16 %v298, %v298
  %v304 = vunpack.c.l.b16 %v281
  %v305 = vunpack.c.l.b16 %v282
  %v306 = vunpack.c.l.b16 %v283
  %v307 = vunpack.c.l.b16 %v284
  %v308 = vpack.c.b16 %v305, %v304
  %v309 = vpack.c.b16 %v307, %v306
  %v313 = vsel %vm256, %v299, 0
  %315 = vmatprep.subr.bf16.mxu0 0
  %316 = vmatpush1.bf16.msra.mxu0 %v308
  %317 = vmatprep.subr.bf16.mxu0 0
  %318 = vmatpush1.bf16.msra.mxu0 %v309
  %319 = vmatprep.subr.bf16.mxu0 0
  %320 = vmatpush1.bf16.msra.mxu0 0
  %321 = vmatprep.subr.bf16.mxu0 0
  %322 = vmatpush1.bf16.msra.mxu0 0
  %323 = vmatprep.subr.bf16.mxu0 0
  %324 = vmatpush1.bf16.msra.mxu0 0
  %325 = vmatprep.subr.bf16.mxu0 0
  %326 = vmatpush1.bf16.msra.mxu0 0
  %327 = vmatprep.subr.bf16.mxu0 0
  %328 = vmatpush1.bf16.msra.mxu0 0
  %329 = vmatprep.subr.bf16.mxu0 0
  %330 = vmatpush1.bf16.msra.mxu0 0
  %331 = vmatprep.subr.bf16.mxu0 0
  %332 = vmatpush1.bf16.msra.mxu0 0
  %333 = vmatprep.subr.bf16.mxu0 0
  %334 = vmatpush1.bf16.msra.mxu0 0
  %335 = vmatprep.subr.bf16.mxu0 0
  %336 = vmatpush1.bf16.msra.mxu0 0
  %337 = vmatprep.subr.bf16.mxu0 0
  %338 = vmatpush1.bf16.msra.mxu0 0
  %339 = vmatprep.subr.bf16.mxu0 0
  %340 = vmatpush1.bf16.msra.mxu0 0
  %341 = vmatprep.subr.bf16.mxu0 0
  %342 = vmatpush1.bf16.msra.mxu0 0
  %343 = vmatprep.subr.bf16.mxu0 0
  %344 = vmatpush1.bf16.msra.mxu0 0
  %345 = vmatprep.subr.bf16.mxu0 0
  %346 = vmatpush1.bf16.msra.mxu0 0
  %347 = vmatprep.mubr.bf16.mxu0 0
  %348 = vmatmul.mubr.bf16.gmra.mrb[0].mxu0 %v313
  %v349 = vpop.f32.mrb[0].mxu0
  %v350 = vadd.f32 %v290, %v349
  %v351 = vpop.f32.mrb[0].mxu0
  %v352 = vpop.f32.mrb[0].mxu0
  %v353 = vpop.f32.mrb[0].mxu0
  %354 = vdwg.mxu0
  %v355 = vpack.c.bf16 %v225, %v225
  %v356 = vld [vmem:[%s7] sm:$0xf]
  %v357 = vld [vmem:[%s7 + $0x4] sm:$0xf]
  %v358 = vld [vmem:[%s7 + $0x8] sm:$0xf]
  %v359 = vld [vmem:[%s7 + $0xc] sm:$0xf]
  %v364 = vunpack.c.l.b16 %v356
  %v365 = vunpack.c.l.b16 %v357
  %v366 = vunpack.c.l.b16 %v358
  %v367 = vunpack.c.l.b16 %v359
  %v368 = vpack.c.b16 %v365, %v364
  %v369 = vpack.c.b16 %v367, %v366
  %v373 = vsel %vm256, %v355, 0
  %375 = vmatprep.subr.bf16.mxu0 0
  %376 = vmatpush1.bf16.msra.mxu0 %v368
  %377 = vmatprep.subr.bf16.mxu0 0
  %378 = vmatpush1.bf16.msra.mxu0 %v369
  %379 = vmatprep.subr.bf16.mxu0 0
  %380 = vmatpush1.bf16.msra.mxu0 0
  %381 = vmatprep.subr.bf16.mxu0 0
  %382 = vmatpush1.bf16.msra.mxu0 0
  %383 = vmatprep.subr.bf16.mxu0 0
  %384 = vmatpush1.bf16.msra.mxu0 0
  %385 = vmatprep.subr.bf16.mxu0 0
  %386 = vmatpush1.bf16.msra.mxu0 0
  %387 = vmatprep.subr.bf16.mxu0 0
  %388 = vmatpush1.bf16.msra.mxu0 0
  %389 = vmatprep.subr.bf16.mxu0 0
  %390 = vmatpush1.bf16.msra.mxu0 0
  %391 = vmatprep.subr.bf16.mxu0 0
  %392 = vmatpush1.bf16.msra.mxu0 0
  %393 = vmatprep.subr.bf16.mxu0 0
  %394 = vmatpush1.bf16.msra.mxu0 0
  %395 = vmatprep.subr.bf16.mxu0 0
  %396 = vmatpush1.bf16.msra.mxu0 0
  %397 = vmatprep.subr.bf16.mxu0 0
  %398 = vmatpush1.bf16.msra.mxu0 0
  %399 = vmatprep.subr.bf16.mxu0 0
  %400 = vmatpush1.bf16.msra.mxu0 0
  %401 = vmatprep.subr.bf16.mxu0 0
  %402 = vmatpush1.bf16.msra.mxu0 0
  %403 = vmatprep.subr.bf16.mxu0 0
  %404 = vmatpush1.bf16.msra.mxu0 0
  %405 = vmatprep.subr.bf16.mxu0 0
  %406 = vmatpush1.bf16.msra.mxu0 0
  %407 = vmatprep.mubr.bf16.mxu0 0
  %408 = vmatmul.mubr.bf16.gmra.mrb[0].mxu0 %v373
  %v409 = vpop.f32.mrb[0].mxu0
  %v410 = vadd.f32 0.0, %v409
  %v411 = vpop.f32.mrb[0].mxu0
  %v412 = vpop.f32.mrb[0].mxu0
  %v413 = vpop.f32.mrb[0].mxu0
  %414 = vdwg.mxu0
  %v415 = vpack.c.bf16 %v350, %v350
  %v416 = vld [vmem:[%s8] sm:$0xf]
  %v417 = vld [vmem:[%s8 + $0x4] sm:$0xf]
  %v418 = vld [vmem:[%s8 + $0x8] sm:$0xf]
  %v419 = vld [vmem:[%s8 + $0xc] sm:$0xf]
  %v424 = vunpack.c.l.b16 %v416
  %v425 = vunpack.c.l.b16 %v417
  %v426 = vunpack.c.l.b16 %v418
  %v427 = vunpack.c.l.b16 %v419
  %v428 = vpack.c.b16 %v425, %v424
  %v429 = vpack.c.b16 %v427, %v426
  %v433 = vsel %vm256, %v415, 0
  %435 = vmatprep.subr.bf16.mxu0 0
  %436 = vmatpush1.bf16.msra.mxu0 %v428
  %437 = vmatprep.subr.bf16.mxu0 0
  %438 = vmatpush1.bf16.msra.mxu0 %v429
  %439 = vmatprep.subr.bf16.mxu0 0
  %440 = vmatpush1.bf16.msra.mxu0 0
  %441 = vmatprep.subr.bf16.mxu0 0
  %442 = vmatpush1.bf16.msra.mxu0 0
  %443 = vmatprep.subr.bf16.mxu0 0
  %444 = vmatpush1.bf16.msra.mxu0 0
  %445 = vmatprep.subr.bf16.mxu0 0
  %446 = vmatpush1.bf16.msra.mxu0 0
  %447 = vmatprep.subr.bf16.mxu0 0
  %448 = vmatpush1.bf16.msra.mxu0 0
  %449 = vmatprep.subr.bf16.mxu0 0
  %450 = vmatpush1.bf16.msra.mxu0 0
  %451 = vmatprep.subr.bf16.mxu0 0
  %452 = vmatpush1.bf16.msra.mxu0 0
  %453 = vmatprep.subr.bf16.mxu0 0
  %454 = vmatpush1.bf16.msra.mxu0 0
  %455 = vmatprep.subr.bf16.mxu0 0
  %456 = vmatpush1.bf16.msra.mxu0 0
  %457 = vmatprep.subr.bf16.mxu0 0
  %458 = vmatpush1.bf16.msra.mxu0 0
  %459 = vmatprep.subr.bf16.mxu0 0
  %460 = vmatpush1.bf16.msra.mxu0 0
  %461 = vmatprep.subr.bf16.mxu0 0
  %462 = vmatpush1.bf16.msra.mxu0 0
  %463 = vmatprep.subr.bf16.mxu0 0
  %464 = vmatpush1.bf16.msra.mxu0 0
  %465 = vmatprep.subr.bf16.mxu0 0
  %466 = vmatpush1.bf16.msra.mxu0 0
  %467 = vmatprep.mubr.bf16.mxu0 0
  %468 = vmatmul.mubr.bf16.gmra.mrb[0].mxu0 %v433
  %v469 = vpop.f32.mrb[0].mxu0
  %v470 = vadd.f32 0.0, %v469
  %v471 = vpop.f32.mrb[0].mxu0
  %v472 = vpop.f32.mrb[0].mxu0
  %v473 = vpop.f32.mrb[0].mxu0
  %474 = vdwg.mxu0
  %v475 = vpack.c.bf16 %v410, %v410
  %v476 = vld [vmem:[%s9] sm:$0xf]
  %v477 = vld [vmem:[%s9 + $0x4] sm:$0xf]
  %v478 = vld [vmem:[%s9 + $0x8] sm:$0xf]
  %v479 = vld [vmem:[%s9 + $0xc] sm:$0xf]
  %v480 = vld [vmem:[%s10] sm:$0x1]
  %v482 = vlaneseq
  %v483 = vshrl.u32 %v482, 7
  %v484 = vsub.s32 0, %v483
  %v485 = vrot.slane %v480, %v484
  %v491 = vunpack.c.l.b16 %v476
  %v492 = vunpack.c.l.b16 %v477
  %v493 = vunpack.c.l.b16 %v478
  %v494 = vunpack.c.l.b16 %v479
  %v495 = vpack.c.b16 %v492, %v491
  %v496 = vpack.c.b16 %v494, %v493
  %v500 = vsel %vm256, %v475, 0
  %502 = vmatprep.subr.bf16.mxu0 0
  %503 = vmatpush1.bf16.msra.mxu0 %v495
  %504 = vmatprep.subr.bf16.mxu0 0
  %505 = vmatpush1.bf16.msra.mxu0 %v496
  %506 = vmatprep.subr.bf16.mxu0 0
  %507 = vmatpush1.bf16.msra.mxu0 0
  %508 = vmatprep.subr.bf16.mxu0 0
  %509 = vmatpush1.bf16.msra.mxu0 0
  %510 = vmatprep.subr.bf16.mxu0 0
  %511 = vmatpush1.bf16.msra.mxu0 0
  %512 = vmatprep.subr.bf16.mxu0 0
  %513 = vmatpush1.bf16.msra.mxu0 0
  %514 = vmatprep.subr.bf16.mxu0 0
  %515 = vmatpush1.bf16.msra.mxu0 0
  %516 = vmatprep.subr.bf16.mxu0 0
  %517 = vmatpush1.bf16.msra.mxu0 0
  %518 = vmatprep.subr.bf16.mxu0 0
  %519 = vmatpush1.bf16.msra.mxu0 0
  %520 = vmatprep.subr.bf16.mxu0 0
  %521 = vmatpush1.bf16.msra.mxu0 0
  %522 = vmatprep.subr.bf16.mxu0 0
  %523 = vmatpush1.bf16.msra.mxu0 0
  %524 = vmatprep.subr.bf16.mxu0 0
  %525 = vmatpush1.bf16.msra.mxu0 0
  %526 = vmatprep.subr.bf16.mxu0 0
  %527 = vmatpush1.bf16.msra.mxu0 0
  %528 = vmatprep.subr.bf16.mxu0 0
  %529 = vmatpush1.bf16.msra.mxu0 0
  %530 = vmatprep.subr.bf16.mxu0 0
  %531 = vmatpush1.bf16.msra.mxu0 0
  %532 = vmatprep.subr.bf16.mxu0 0
  %533 = vmatpush1.bf16.msra.mxu0 0
  %534 = vmatprep.mubr.bf16.mxu0 0
  %535 = vmatmul.mubr.bf16.gmra.mrb[0].mxu0 %v500
  %v536 = vpop.f32.mrb[0].mxu0
  %v537 = vadd.f32 %v485, %v536
  %v538 = vpop.f32.mrb[0].mxu0
  %v539 = vpop.f32.mrb[0].mxu0
  %v540 = vpop.f32.mrb[0].mxu0
  %541 = vdwg.mxu0
  %542 = vst [vmem:[%s11] sm:$0x3] %v537
  %v543 = vpack.c.bf16 %v470, %v470
  %v544 = vld [vmem:[%s9] sm:$0xf]
  %v545 = vld [vmem:[%s9 + $0x4] sm:$0xf]
  %v546 = vld [vmem:[%s9 + $0x8] sm:$0xf]
  %v547 = vld [vmem:[%s9 + $0xc] sm:$0xf]
  %v552 = vunpack.c.l.b16 %v544
  %v553 = vunpack.c.l.b16 %v545
  %v554 = vunpack.c.l.b16 %v546
  %v555 = vunpack.c.l.b16 %v547
  %v556 = vpack.c.b16 %v553, %v552
  %v557 = vpack.c.b16 %v555, %v554
  %v561 = vsel %vm256, %v543, 0
  %563 = vmatprep.subr.bf16.mxu0 0
  %564 = vmatpush1.bf16.msra.mxu0 %v556
  %565 = vmatprep.subr.bf16.mxu0 0
  %566 = vmatpush1.bf16.msra.mxu0 %v557
  %567 = vmatprep.subr.bf16.mxu0 0
  %568 = vmatpush1.bf16.msra.mxu0 0
  %569 = vmatprep.subr.bf16.mxu0 0
  %570 = vmatpush1.bf16.msra.mxu0 0
  %571 = vmatprep.subr.bf16.mxu0 0
  %572 = vmatpush1.bf16.msra.mxu0 0
  %573 = vmatprep.subr.bf16.mxu0 0
  %574 = vmatpush1.bf16.msra.mxu0 0
  %575 = vmatprep.subr.bf16.mxu0 0
  %576 = vmatpush1.bf16.msra.mxu0 0
  %577 = vmatprep.subr.bf16.mxu0 0
  %578 = vmatpush1.bf16.msra.mxu0 0
  %579 = vmatprep.subr.bf16.mxu0 0
  %580 = vmatpush1.bf16.msra.mxu0 0
  %581 = vmatprep.subr.bf16.mxu0 0
  %582 = vmatpush1.bf16.msra.mxu0 0
  %583 = vmatprep.subr.bf16.mxu0 0
  %584 = vmatpush1.bf16.msra.mxu0 0
  %585 = vmatprep.subr.bf16.mxu0 0
  %586 = vmatpush1.bf16.msra.mxu0 0
  %587 = vmatprep.subr.bf16.mxu0 0
  %588 = vmatpush1.bf16.msra.mxu0 0
  %589 = vmatprep.subr.bf16.mxu0 0
  %590 = vmatpush1.bf16.msra.mxu0 0
  %591 = vmatprep.subr.bf16.mxu0 0
  %592 = vmatpush1.bf16.msra.mxu0 0
  %593 = vmatprep.subr.bf16.mxu0 0
  %594 = vmatpush1.bf16.msra.mxu0 0
  %595 = vmatprep.mubr.bf16.mxu0 0
  %596 = vmatmul.mubr.bf16.gmra.mrb[0].mxu0 %v561
  %v597 = vpop.f32.mrb[0].mxu0
  %v598 = vadd.f32 0.0, %v597
  %v599 = vpop.f32.mrb[0].mxu0
  %v600 = vpop.f32.mrb[0].mxu0
  %v601 = vpop.f32.mrb[0].mxu0
  %602 = vdwg.mxu0
  %603 = vst [vmem:[%s12] sm:$0x3] %v598
  // Predicated region
  $region46: #{_itm_forward_impl.1} parent=0 // pred_check
    _
  $region47: #{_itm_forward_impl.1} parent=0 // pred_check_branch
    %605 = sbr.rel (0) target = $region49
  $region48: #{_itm_forward_impl.1} parent=0 // pred_region
    _
  $region49: #{_itm_forward_impl.1} parent=0 // pred_fallthru
    _
  // Predicated region
  $region50: #{_itm_forward_impl.1} parent=0 // pred_check
    _
  $region51: #{_itm_forward_impl.1} parent=0 // pred_check_branch
    %607 = sbr.rel (0) target = $region53
  $region52: #{_itm_forward_impl.1} parent=0 // pred_region
    _
  $region53: #{_itm_forward_impl.1} parent=0 // pred_fallthru
    _
  // Predicated region
  $region54: #{_itm_forward_impl.1} parent=0 // pred_check
    _
  $region55: #{_itm_forward_impl.1} parent=0 // pred_check_branch
    %609 = sbr.rel (0) target = $region57
  $region56: #{_itm_forward_impl.1} parent=0 // pred_region
    _
  $region57: #{_itm_forward_impl.1} parent=0 // pred_fallthru
    _
  // Predicated region
  $region58: #{_itm_forward_impl.1} parent=0 // pred_check
    _
  $region59: #{_itm_forward_impl.1} parent=0 // pred_check_branch
    %611 = sbr.rel (0) target = $region61
  $region60: #{_itm_forward_impl.1} parent=0 // pred_region
    _
  $region61: #{_itm_forward_impl.1} parent=0 // pred_fallthru
    _

</llo_original>
